<compile_context>
chip_gen: v7x
topology: tpu7x:2x2x1
jax: 0.10.0
libtpu: 0.0.40
codegen_flags: <defaults>
</compile_context>

<pallas_src>
import jax
import jax.numpy as jnp
from jax.experimental import pallas as pl
from jax.experimental.pallas import tpu as pltpu


_LANES = 128
_SMALL_PATH_VMEM_BUDGET = 8 * 1024 * 1024   # safe under v5e's 16 MiB scoped default
_TILED_VMEM_LIMIT = 32 * 1024 * 1024        # explicit scoped-VMEM limit, tiled path
_DEFAULT_TILE_SAMPLES = 16384               # ~2 MiB useful f32 x bytes per grid step


def mlp_kernel(x_ref, w1_ref, b1_ref, w2_ref, b2_ref, o_ref):
    """out = relu(x @ W1 + b1) @ W2 + b2 on one (rows, lanes) block."""
    h = jnp.dot(x_ref[...], w1_ref[...], preferred_element_type=jnp.float32)
    h = jnp.maximum(h + b1_ref[...], 0.0)
    out = jnp.dot(h.astype(w2_ref.dtype), w2_ref[...],
                  preferred_element_type=jnp.float32)
    o_ref[...] = (out + b2_ref[...]).astype(o_ref.dtype)


def _round_up(n, m):
    return ((n + m - 1) // m) * m


def _lane_padded_row_bytes(cols, itemsize):
    return _round_up(max(cols, 1), _LANES) * itemsize


def _fold_params(w1, b1, w2, b2, pack, dtype):
    """PyTorch-layout (out, in) weights -> (in, out), block-diagonal x `pack`."""
    w1t = w1.T.astype(dtype)                      # (F, H)
    w2t = w2.T.astype(dtype)                      # (H, C)
    if pack == 1:
        w1f, w2f = w1t, w2t
    else:
        eye = jnp.eye(pack, dtype=dtype)
        w1f = jnp.kron(eye, w1t)                  # (P*F, P*H) block-diagonal
        w2f = jnp.kron(eye, w2t)                  # (P*H, P*C) block-diagonal
    b1f = jnp.tile(b1, pack).reshape(1, -1).astype(jnp.float32)
    b2f = jnp.tile(b2, pack).reshape(1, -1).astype(jnp.float32)
    return w1f, b1f, w2f, b2f


def _batch_dim_semantics():
    kind = ""
    try:
        kind = jax.devices()[0].device_kind.lower()
    except Exception:
        pass
    if "v7" in kind and hasattr(pltpu, "CORE_PARALLEL"):
        # v7x has two TensorCores per chip; CORE_PARALLEL is what actually
        # splits a grid axis across them ("parallel" is a near no-op).
        return (pltpu.CORE_PARALLEL,)
    return ("parallel",)


def _forward_whole(xp, w1f, b1f, w2f, b2f):
    """Single no-grid call: everything resident in VMEM, no pipelining."""
    bp = xp.shape[0]
    cp = w2f.shape[1]
    vmem = pl.BlockSpec(memory_space=pltpu.MemorySpace.VMEM)
    return pl.pallas_call(
        mlp_kernel,
        out_shape=jax.ShapeDtypeStruct((bp, cp), jnp.float32),
        in_specs=[vmem] * 5,
        out_specs=vmem,
    )(xp, w1f, b1f, w2f, b2f)


def _forward_tiled(xp, w1f, b1f, w2f, b2f, tile_rows):
    """1-D grid over the packed batch; weights/biases stay resident."""
    bp, fp = xp.shape
    hp = w1f.shape[1]
    cp = w2f.shape[1]
    n_tiles = pl.cdiv(bp, tile_rows)
    itemsize = xp.dtype.itemsize
    cost = pl.CostEstimate(
        flops=2 * bp * (fp * hp + hp * cp),
        transcendentals=0,
        bytes_accessed=(bp * fp * itemsize + bp * cp * 4
                        + (w1f.size + w2f.size) * itemsize
                        + (b1f.size + b2f.size) * 4),
    )
    return pl.pallas_call(
        mlp_kernel,
        out_shape=jax.ShapeDtypeStruct((bp, cp), jnp.float32),
        grid=(n_tiles,),
        in_specs=[
            pl.BlockSpec((tile_rows, fp), lambda i: (i, 0)),   # x: batch-tiled
            pl.BlockSpec((fp, hp), lambda i: (0, 0)),          # W1': resident
            pl.BlockSpec((1, hp), lambda i: (0, 0)),           # b1': resident
            pl.BlockSpec((hp, cp), lambda i: (0, 0)),          # W2': resident
            pl.BlockSpec((1, cp), lambda i: (0, 0)),           # b2': resident
        ],
        out_specs=pl.BlockSpec((tile_rows, cp), lambda i: (i, 0)),
        compiler_params=pltpu.CompilerParams(
            dimension_semantics=_batch_dim_semantics(),
            vmem_limit_bytes=_TILED_VMEM_LIMIT),
        cost_estimate=cost,
    )(xp, w1f, b1f, w2f, b2f)


def _forward_group(x, w1, b1, w2, b2, pack, tile_samples, compute_dtype):
    """Run one group whose batch is a multiple of `pack`."""
    b, f = x.shape
    h = w1.shape[0]
    c = w2.shape[0]
    bp = b // pack
    xp = x.reshape(bp, pack * f).astype(compute_dtype)   # metadata-only reshape
    w1f, b1f, w2f, b2f = _fold_params(w1, b1, w2, b2, pack, compute_dtype)

    itemsize = jnp.dtype(compute_dtype).itemsize
    # x / hidden / output rows are each lane-padded to 128 while in VMEM.
    per_row = (_lane_padded_row_bytes(pack * f, itemsize)
               + _lane_padded_row_bytes(pack * h, 4)
               + _lane_padded_row_bytes(pack * c, 4))
    est_vmem = (bp * per_row + (w1f.size + w2f.size) * itemsize
                + (b1f.size + b2f.size) * 4)

    if est_vmem <= _SMALL_PATH_VMEM_BUDGET:
        outp = _forward_whole(xp, w1f, b1f, w2f, b2f)
    else:
        tile_rows = max(8, (tile_samples // pack) // 8 * 8)
        tile_rows = min(tile_rows, _round_up(bp, 8))
        outp = _forward_tiled(xp, w1f, b1f, w2f, b2f, tile_rows)
    return outp.reshape(b, c)                             # metadata-only reshape


def simple_cnn_forward(x, w1, b1, w2, b2, *,
                       tile_samples=_DEFAULT_TILE_SAMPLES,
                       compute_dtype=jnp.float32):
    """Forward pass of SimpleCNN.

    x: (B, F) f32.  w1: (H, F), b1: (H,), w2: (C, H), b2: (C,)  (PyTorch layout).
    """
    b, f = x.shape
    # Pack `pack` samples per 128-lane row so loads are lane-dense.
    pack = _LANES // f if (f <= _LANES and _LANES % f == 0) else 1
    b_main = (b // pack) * pack

    if b_main == b:
        return _forward_group(x, w1, b1, w2, b2, pack, tile_samples, compute_dtype)

    # Ragged sample tail (< pack rows): run it unpacked through the small path.
    # TODO(synk): the x[:b_main] prefix slice may materialize a copy; only hit
    # when B % pack != 0 (never in the tests below).
    outs = []
    if b_main > 0:
        outs.append(_forward_group(x[:b_main], w1, b1, w2, b2, pack,
                                   tile_samples, compute_dtype))
    outs.append(_forward_group(x[b_main:], w1, b1, w2, b2, 1,
                               tile_samples, compute_dtype))
    return jnp.concatenate(outs, axis=0)


def reference_forward(x, w1, b1, w2, b2):
    h = jnp.maximum(x @ w1.T + b1, 0.0)
    return h @ w2.T + b2


if __name__ == "__main__":
    # Shapes implied by the module: fc1 = Linear(X_train.shape[1], 8),
    # fc2 = Linear(8, num_classes).
    B, F, H, C = 8, 32, 8, 4

    key = jax.random.PRNGKey(0)
    kx, kw1, kb1, kw2, kb2, kxb = jax.random.split(key, 6)

    x = jax.random.normal(kx, (B, F), dtype=jnp.float32)
    lim1 = 1.0 / jnp.sqrt(F)
    lim2 = 1.0 / jnp.sqrt(H)
    w1 = jax.random.uniform(kw1, (H, F), jnp.float32, -lim1, lim1)
    b1 = jax.random.uniform(kb1, (H,), jnp.float32, -lim1, lim1)
    w2 = jax.random.uniform(kw2, (C, H), jnp.float32, -lim2, lim2)
    b2 = jax.random.uniform(kb2, (C,), jnp.float32, -lim2, lim2)

    # Small batch: packed, single no-grid call with everything in VMEM.
    out = jax.block_until_ready(simple_cnn_forward(x, w1, b1, w2, b2))
    ref = reference_forward(x, w1, b1, w2, b2)
    assert out.shape == (B, C)
    assert jnp.allclose(out, ref, atol=1e-4, rtol=1e-4), "small-path mismatch"

    # Larger batch: exercises the batch-tiled grid path (2 tiles x 16K samples).
    B_big = 32768
    x_big = jax.random.normal(kxb, (B_big, F), dtype=jnp.float32)
    out_big = jax.block_until_ready(simple_cnn_forward(x_big, w1, b1, w2, b2))
    ref_big = reference_forward(x_big, w1, b1, w2, b2)
    assert out_big.shape == (B_big, C)
    assert jnp.allclose(out_big, ref_big, atol=1e-4, rtol=1e-4), "tiled-path mismatch"

    print("KERNEL_OK")
</pallas_src>

<mosaic_0001>
module attributes {stable_mosaic.version = 11 : i64} {
  func.func @mlp_kernel(%arg0: memref<2x128xf32, #tpu.memory_space<vmem>>, %arg1: memref<128x32xf32, #tpu.memory_space<vmem>>, %arg2: memref<1x32xf32, #tpu.memory_space<vmem>>, %arg3: memref<32x16xf32, #tpu.memory_space<vmem>>, %arg4: memref<1x16xf32, #tpu.memory_space<vmem>>, %arg5: memref<2x16xf32, #tpu.memory_space<vmem>>) attributes {dimension_semantics = [], scalar_prefetch = 0 : i64, scratch_operands = 0 : i64, tpu.core_type = #tpu.core_type<tc>} {
    %c0 = arith.constant 0 : index
    %c0_0 = arith.constant 0 : index
    %0 = vector.load %arg0[%c0, %c0_0] : memref<2x128xf32, #tpu.memory_space<vmem>>, vector<2x128xf32>
    %c0_1 = arith.constant 0 : index
    %c0_2 = arith.constant 0 : index
    %1 = vector.load %arg1[%c0_1, %c0_2] : memref<128x32xf32, #tpu.memory_space<vmem>>, vector<128x32xf32>
    %cst = arith.constant dense<0.000000e+00> : vector<2x32xf32>
    %2 = tpu.matmul %0, %1, %cst {dimension_numbers = #tpu.dot_dimension_numbers<[1], [0], [0], [1], [0, 0, 1, 1], [], []>} : vector<2x128xf32>, vector<128x32xf32>, vector<2x32xf32> -> vector<2x32xf32>
    %c0_3 = arith.constant 0 : index
    %c0_4 = arith.constant 0 : index
    %3 = vector.load %arg2[%c0_3, %c0_4] : memref<1x32xf32, #tpu.memory_space<vmem>>, vector<1x32xf32>
    %4 = vector.broadcast %3 : vector<1x32xf32> to vector<2x32xf32>
    %5 = arith.addf %2, %4 : vector<2x32xf32>
    %cst_5 = arith.constant 0.000000e+00 : f32
    %6 = vector.broadcast %cst_5 : f32 to vector<2x32xf32>
    %7 = arith.maximumf %5, %6 : vector<2x32xf32>
    %c0_6 = arith.constant 0 : index
    %c0_7 = arith.constant 0 : index
    %8 = vector.load %arg3[%c0_6, %c0_7] : memref<32x16xf32, #tpu.memory_space<vmem>>, vector<32x16xf32>
    %cst_8 = arith.constant dense<0.000000e+00> : vector<2x16xf32>
    %9 = tpu.matmul %7, %8, %cst_8 {dimension_numbers = #tpu.dot_dimension_numbers<[1], [0], [0], [1], [0, 0, 1, 1], [], []>} : vector<2x32xf32>, vector<32x16xf32>, vector<2x16xf32> -> vector<2x16xf32>
    %c0_9 = arith.constant 0 : index
    %c0_10 = arith.constant 0 : index
    %10 = vector.load %arg4[%c0_9, %c0_10] : memref<1x16xf32, #tpu.memory_space<vmem>>, vector<1x16xf32>
    %11 = vector.broadcast %10 : vector<1x16xf32> to vector<2x16xf32>
    %12 = arith.addf %9, %11 : vector<2x16xf32>
    %c0_11 = arith.constant 0 : index
    %c0_12 = arith.constant 0 : index
    %13 = vector.load %arg5[%c0_11, %c0_12] : memref<2x16xf32, #tpu.memory_space<vmem>>, vector<2x16xf32>
    tpu.vector_store %arg5[%c0_11, %c0_12], %12 {strides = array<i32>} : memref<2x16xf32, #tpu.memory_space<vmem>>, vector<2x16xf32>,
    return
  }
}

</mosaic_0001>

<llo_original>
// kernel: tpu_custom_call.1
$region0: #{tpu_custom_call.1}
  #allocation0 [shape = 'u32[]', space=smem, size = 0x4, offset = 0x4, fixed_abs, tag = 'smem constant byte address 0x4 - core index']
  #allocation1 [shape = 'u32[144,128]{1,0:T(1,128)}', space=vmem, size = 0x12000, scoped, tag = 'internal scratch']
  %s0 = inlined_call_operand.vmem [shape: f32[2,128], index: 0, kind: input, shape index: {}]
  %s1 = inlined_call_operand.vmem [shape: f32[128,32], index: 1, kind: input, shape index: {}]
  %s2 = inlined_call_operand.vmem [shape: f32[1,32], index: 2, kind: input, shape index: {}]
  %s3 = inlined_call_operand.vmem [shape: f32[32,16], index: 3, kind: input, shape index: {}]
  %s4 = inlined_call_operand.vmem [shape: f32[1,16], index: 4, kind: input, shape index: {}]
  %s5 = inlined_call_operand.hbm [shape: f32[2,16], index: 5, kind: output, shape index: {}]
  %s6 = sld [smem:[#allocation0]]
  $region30: #{tpu_custom_call.1} parent=0
    _
  %s8 = ssub.s32 1, %s6
  %s9 = scalar_select 0, %s8, %s6
  $region1: #{tpu_custom_call.1} parent=0
    #allocation2 [shape = 'u8[1024]{0}', space=vmem, size = 0x400, scoped, tag = 'output window, operand 0, single buffered']
    #allocation3 [shape = 's32[1]{0}', space=sflag, size = 0x4, scoped, tag = 'scoped memory for tpu_custom_call.1']
    %10 = vsyncpa [#allocation3], 0
    // Predicated region
    $region2: #{tpu_custom_call.1} parent=1 // pred_check
      _
    $region3: #{tpu_custom_call.1} parent=1 // pred_check_branch
      %12 = sbr.rel (0) target = $region5
    $region4: #{tpu_custom_call.1} parent=1 // pred_region
      _
    $region5: #{tpu_custom_call.1} parent=1 // pred_fallthru
      _
    // Predicated region
    $region6: #{tpu_custom_call.1} parent=1 // pred_check
      _
    $region7: #{tpu_custom_call.1} parent=1 // pred_check_branch
      %14 = sbr.rel (0) target = $region9
    $region8: #{tpu_custom_call.1} parent=1 // pred_region
      _
    $region9: #{tpu_custom_call.1} parent=1 // pred_fallthru
      _
    // Predicated region
    $region10: #{tpu_custom_call.1} parent=1 // pred_check
      _
    $region11: #{tpu_custom_call.1} parent=1 // pred_check_branch
      %16 = sbr.rel (0) target = $region13
    $region12: #{tpu_custom_call.1} parent=1 // pred_region
      _
    $region13: #{tpu_custom_call.1} parent=1 // pred_fallthru
      _
    // Predicated region
    $region14: #{tpu_custom_call.1} parent=1 // pred_check
      _
    $region15: #{tpu_custom_call.1} parent=1 // pred_check_branch
      %18 = sbr.rel (0) target = $region17
    $region16: #{tpu_custom_call.1} parent=1 // pred_region
      _
    $region17: #{tpu_custom_call.1} parent=1 // pred_fallthru
      _
    // Predicated region
    $region18: #{tpu_custom_call.1} parent=1 // pred_check
      _
    $region19: #{tpu_custom_call.1} parent=1 // pred_check_branch
      %20 = sbr.rel (0) target = $region21
    $region20: #{tpu_custom_call.1} parent=1 // pred_region
      _
    $region21: #{tpu_custom_call.1} parent=1 // pred_fallthru
      _
    %v21 = vld [vmem:[%s0] sm:$0x3]
    %v22 = vld [vmem:[%s1] sm:$0xff]
    %v23 = vld [vmem:[%s1 + $0x8] sm:$0xff]
    %v24 = vld [vmem:[%s1 + $0x10] sm:$0xff]
    %v25 = vld [vmem:[%s1 + $0x18] sm:$0xff]
    %v26 = vld [vmem:[%s1 + $0x20] sm:$0xff]
    %v27 = vld [vmem:[%s1 + $0x28] sm:$0xff]
    %v28 = vld [vmem:[%s1 + $0x30] sm:$0xff]
    %v29 = vld [vmem:[%s1 + $0x38] sm:$0xff]
    %v30 = vld [vmem:[%s1 + $0x40] sm:$0xff]
    %v31 = vld [vmem:[%s1 + $0x48] sm:$0xff]
    %v32 = vld [vmem:[%s1 + $0x50] sm:$0xff]
    %v33 = vld [vmem:[%s1 + $0x58] sm:$0xff]
    %v34 = vld [vmem:[%s1 + $0x60] sm:$0xff]
    %v35 = vld [vmem:[%s1 + $0x68] sm:$0xff]
    %v36 = vld [vmem:[%s1 + $0x70] sm:$0xff]
    %v37 = vld [vmem:[%s1 + $0x78] sm:$0xff]
    %v38 = vld [vmem:[%s2] sm:$0x1]
    %v40 = vlaneseq
    %v41 = vshrl.u32 %v40, 7
    %v42 = vsub.s32 0, %v41
    %v43 = vrot.slane %v38, %v42
    %45 = vmatprep.subr.mxu0 0.0
    %46 = vmatpush1.msra.mxu0 %v22
    %47 = vmatprep.subr.mxu0 0.0
    %48 = vmatpush1.msra.mxu0 %v23
    %49 = vmatprep.subr.mxu0 0.0
    %50 = vmatpush1.msra.mxu0 %v24
    %51 = vmatprep.subr.mxu0 0.0
    %52 = vmatpush1.msra.mxu0 %v25
    %53 = vmatprep.subr.mxu0 0.0
    %54 = vmatpush1.msra.mxu0 %v26
    %55 = vmatprep.subr.mxu0 0.0
    %56 = vmatpush1.msra.mxu0 %v27
    %57 = vmatprep.subr.mxu0 0.0
    %58 = vmatpush1.msra.mxu0 %v28
    %59 = vmatprep.subr.mxu0 0.0
    %60 = vmatpush1.msra.mxu0 %v29
    %61 = vmatprep.subr.mxu0 0.0
    %62 = vmatpush1.msra.mxu0 %v30
    %63 = vmatprep.subr.mxu0 0.0
    %64 = vmatpush1.msra.mxu0 %v31
    %65 = vmatprep.subr.mxu0 0.0
    %66 = vmatpush1.msra.mxu0 %v32
    %67 = vmatprep.subr.mxu0 0.0
    %68 = vmatpush1.msra.mxu0 %v33
    %69 = vmatprep.subr.mxu0 0.0
    %70 = vmatpush1.msra.mxu0 %v34
    %71 = vmatprep.subr.mxu0 0.0
    %72 = vmatpush1.msra.mxu0 %v35
    %73 = vmatprep.subr.mxu0 0.0
    %74 = vmatpush1.msra.mxu0 %v36
    %75 = vmatprep.subr.mxu0 0.0
    %76 = vmatpush1.msra.mxu0 %v37
    %77 = vmatprep.subr.mxu0 0.0
    %78 = vmatpush1.msra.mxu0 0.0
    %79 = vmatprep.subr.mxu0 0.0
    %80 = vmatpush1.msra.mxu0 0.0
    %81 = vmatprep.subr.mxu0 0.0
    %82 = vmatpush1.msra.mxu0 0.0
    %83 = vmatprep.subr.mxu0 0.0
    %84 = vmatpush1.msra.mxu0 0.0
    %85 = vmatprep.subr.mxu0 0.0
    %86 = vmatpush1.msra.mxu0 0.0
    %87 = vmatprep.subr.mxu0 0.0
    %88 = vmatpush1.msra.mxu0 0.0
    %89 = vmatprep.subr.mxu0 0.0
    %90 = vmatpush1.msra.mxu0 0.0
    %91 = vmatprep.subr.mxu0 0.0
    %92 = vmatpush1.msra.mxu0 0.0
    %93 = vmatprep.subr.mxu0 0.0
    %94 = vmatpush1.msra.mxu0 0.0
    %95 = vmatprep.subr.mxu0 0.0
    %96 = vmatpush1.msra.mxu0 0.0
    %97 = vmatprep.subr.mxu0 0.0
    %98 = vmatpush1.msra.mxu0 0.0
    %99 = vmatprep.subr.mxu0 0.0
    %100 = vmatpush1.msra.mxu0 0.0
    %101 = vmatprep.subr.mxu0 0.0
    %102 = vmatpush1.msra.mxu0 0.0
    %103 = vmatprep.subr.mxu0 0.0
    %104 = vmatpush1.msra.mxu0 0.0
    %105 = vmatprep.subr.mxu0 0.0
    %106 = vmatpush1.msra.mxu0 0.0
    %107 = vmatprep.subr.mxu0 0.0
    %108 = vmatpush1.msra.mxu0 0.0
    %109 = vmatprep.mubr.f32.mxu0 0.0
    %110 = vmatmul.mubr.f32.gmra.mrb[0].mxu0 %v21
    %v111 = vpop.f32.mrb[0].mxu0
    %v112 = vadd.f32 %v43, %v111
    %v113 = vpop.f32.mrb[0].mxu0
    %114 = vdwg.mxu0
    %v115 = vmax.f32 %v112, 0.0
    %v116 = vld [vmem:[%s3] sm:$0xff]
    %v117 = vld [vmem:[%s3 + $0x8] sm:$0xff]
    %v118 = vld [vmem:[%s3 + $0x10] sm:$0xff]
    %v119 = vld [vmem:[%s3 + $0x18] sm:$0xff]
    %v120 = vld [vmem:[%s4] sm:$0x1]
    %v122 = vlaneseq
    %v123 = vshrl.u32 %v122, 7
    %v124 = vsub.s32 0, %v123
    %v125 = vrot.slane %v120, %v124
    %vm127 = vcmask 261120
    %v129 = vsel %vm127, %v115, 0
    %131 = vmatprep.subr.mxu0 0.0
    %132 = vmatpush1.msra.mxu0 %v116
    %133 = vmatprep.subr.mxu0 0.0
    %134 = vmatpush1.msra.mxu0 %v117
    %135 = vmatprep.subr.mxu0 0.0
    %136 = vmatpush1.msra.mxu0 %v118
    %137 = vmatprep.subr.mxu0 0.0
    %138 = vmatpush1.msra.mxu0 %v119
    %139 = vmatprep.subr.mxu0 0.0
    %140 = vmatpush1.msra.mxu0 0.0
    %141 = vmatprep.subr.mxu0 0.0
    %142 = vmatpush1.msra.mxu0 0.0
    %143 = vmatprep.subr.mxu0 0.0
    %144 = vmatpush1.msra.mxu0 0.0
    %145 = vmatprep.subr.mxu0 0.0
    %146 = vmatpush1.msra.mxu0 0.0
    %147 = vmatprep.subr.mxu0 0.0
    %148 = vmatpush1.msra.mxu0 0.0
    %149 = vmatprep.subr.mxu0 0.0
    %150 = vmatpush1.msra.mxu0 0.0
    %151 = vmatprep.subr.mxu0 0.0
    %152 = vmatpush1.msra.mxu0 0.0
    %153 = vmatprep.subr.mxu0 0.0
    %154 = vmatpush1.msra.mxu0 0.0
    %155 = vmatprep.subr.mxu0 0.0
    %156 = vmatpush1.msra.mxu0 0.0
    %157 = vmatprep.subr.mxu0 0.0
    %158 = vmatpush1.msra.mxu0 0.0
    %159 = vmatprep.subr.mxu0 0.0
    %160 = vmatpush1.msra.mxu0 0.0
    %161 = vmatprep.subr.mxu0 0.0
    %162 = vmatpush1.msra.mxu0 0.0
    %163 = vmatprep.subr.mxu0 0.0
    %164 = vmatpush1.msra.mxu0 0.0
    %165 = vmatprep.subr.mxu0 0.0
    %166 = vmatpush1.msra.mxu0 0.0
    %167 = vmatprep.subr.mxu0 0.0
    %168 = vmatpush1.msra.mxu0 0.0
    %169 = vmatprep.subr.mxu0 0.0
    %170 = vmatpush1.msra.mxu0 0.0
    %171 = vmatprep.subr.mxu0 0.0
    %172 = vmatpush1.msra.mxu0 0.0
    %173 = vmatprep.subr.mxu0 0.0
    %174 = vmatpush1.msra.mxu0 0.0
    %175 = vmatprep.subr.mxu0 0.0
    %176 = vmatpush1.msra.mxu0 0.0
    %177 = vmatprep.subr.mxu0 0.0
    %178 = vmatpush1.msra.mxu0 0.0
    %179 = vmatprep.subr.mxu0 0.0
    %180 = vmatpush1.msra.mxu0 0.0
    %181 = vmatprep.subr.mxu0 0.0
    %182 = vmatpush1.msra.mxu0 0.0
    %183 = vmatprep.subr.mxu0 0.0
    %184 = vmatpush1.msra.mxu0 0.0
    %185 = vmatprep.subr.mxu0 0.0
    %186 = vmatpush1.msra.mxu0 0.0
    %187 = vmatprep.subr.mxu0 0.0
    %188 = vmatpush1.msra.mxu0 0.0
    %189 = vmatprep.subr.mxu0 0.0
    %190 = vmatpush1.msra.mxu0 0.0
    %191 = vmatprep.subr.mxu0 0.0
    %192 = vmatpush1.msra.mxu0 0.0
    %193 = vmatprep.subr.mxu0 0.0
    %194 = vmatpush1.msra.mxu0 0.0
    %195 = vmatprep.mubr.f32.mxu0 0.0
    %196 = vmatmul.mubr.f32.gmra.mrb[0].mxu0 %v129
    %v197 = vpop.f32.mrb[0].mxu0
    %v198 = vadd.f32 %v125, %v197
    %v199 = vpop.f32.mrb[0].mxu0
    %200 = vdwg.mxu0
    %vm201 = vcmask 123904
    %202 = vst.msk [vmem:[#allocation2] sm:$0x3] %vm201, %v198
    // Predicated region
    $region22: #{tpu_custom_call.1} parent=1 // pred_check
      _
    $region23: #{tpu_custom_call.1} parent=1 // pred_check_branch
      %204 = sbr.rel (0) target = $region25
    $region24: #{tpu_custom_call.1} parent=1 // pred_region
      %s206 = ssub.s32 32, 32
      %207 = vsyncadd [#allocation3], %s206
      %s209 = sshll.u32 [#allocation2], 4
      %s210 = int_to_ptr.vmem [resolvable:$true] %s209
      %212 = dma.vmem_to_hbm [thread:$0]  %s210, 32, %s5, [#allocation3]
    $region25: #{tpu_custom_call.1} parent=1 // pred_fallthru
      _
    // Predicated region
    $region26: #{tpu_custom_call.1} parent=1 // pred_check
      _
    $region27: #{tpu_custom_call.1} parent=1 // pred_check_branch
      %214 = sbr.rel (0) target = $region29
    $region28: #{tpu_custom_call.1} parent=1 // pred_region
      %215 = dma.done [#allocation3], 32
    $region29: #{tpu_custom_call.1} parent=1 // pred_fallthru
      _
    %216 = vsyncpa [#allocation3], 1

</llo_original>
